<compile_context>
chip_gen: v5e
topology: v5e:2x2
jax: 0.10.0
libtpu: 0.0.40
codegen_flags: <defaults>
</compile_context>

<pallas_src>
import jax
import jax.numpy as jnp
from jax.experimental import pallas as pl
from jax.experimental.pallas import tpu as pltpu


def _round_up(n: int, m: int) -> int:
    return ((n + m - 1) // m) * m


def _pick_block_m(B: int, block_m: int) -> int:
    # The transposed output store puts the batch in the lane dimension, so the
    # batch tile must be a multiple of 128.
    bm = min(block_m, _round_up(B, 128))
    bm = max(128, (bm // 128) * 128)
    # v7x has 2 TensorCores: when there is enough work, make sure the
    # ("parallel",) grid has at least 2 steps so both cores are used.
    if pl.cdiv(B, bm) < 2 <= pl.cdiv(B, 128):
        bm = _round_up(pl.cdiv(B, 2), 128)
    return bm


def mlp_kernel(x_ref, w1_ref, b1_ref, w2_ref, b2_ref, ot_ref):
    # hidden = relu(x @ W1 + b1), f32 accumulation on the MXU.
    w1 = w1_ref[...]
    h = jnp.dot(x_ref[...].astype(w1.dtype), w1,
                preferred_element_type=jnp.float32)        # (bm, 256) f32
    h = jnp.maximum(h + b1_ref[...], 0.0)                   # bias/ReLU in f32
    # Feature-major epilogue: transpose h on the XLU (free slot), then
    # y^T = W2_pt @ h^T so the output store is lane-dense over the batch dim.
    w2 = w2_ref[...]                                         # (16, 256)
    ht = h.T.astype(w2.dtype)                                # (256, bm)
    yt = jnp.dot(w2, ht, preferred_element_type=jnp.float32)  # (16, bm)
    ot_ref[...] = (yt + b2_ref[...]).astype(ot_ref.dtype)


def mlp_forward(x, w1, b1, w2, b2, *, block_m=512):
    """y = relu(x @ w1 + b1) @ w2.T + b2, batch-tiled Pallas kernel.

    x: (B, 20); w1: (20, 256); b1: (256,); w2: (10, 256) [PyTorch layout];
    b2: (10,).  Returns (B, 10).
    """
    B, K = x.shape
    K1, H = w1.shape
    N, H2 = w2.shape
    assert K1 == K and H2 == H

    # Sublane-pad the (tiny) second-layer params: 10 -> 16 output rows.
    N_pad = _round_up(N, 8)
    w2_p = jnp.pad(w2, ((0, N_pad - N), (0, 0)))
    b2_p = jnp.pad(b2.reshape(N, 1), ((0, N_pad - N), (0, 0)))
    b1_r = b1.reshape(1, H)

    bm = _pick_block_m(B, block_m)
    grid = (pl.cdiv(B, bm),)
    itemsize = jnp.dtype(x.dtype).itemsize

    cost = pl.CostEstimate(
        flops=2 * B * (K * H + H * N),
        transcendentals=0,
        bytes_accessed=(B * K * itemsize + N_pad * B * itemsize
                        + w1.size * jnp.dtype(w1.dtype).itemsize
                        + w2_p.size * jnp.dtype(w2_p.dtype).itemsize
                        + (b1.size + b2_p.size) * 4),
    )

    out_t = pl.pallas_call(
        mlp_kernel,
        out_shape=jax.ShapeDtypeStruct((N_pad, B), x.dtype),
        grid=grid,
        in_specs=[
            pl.BlockSpec((bm, K),     lambda i: (i, 0)),  # stream x (no pad)
            pl.BlockSpec((K, H),      lambda i: (0, 0)),  # pinned W1
            pl.BlockSpec((1, H),      lambda i: (0, 0)),  # pinned b1
            pl.BlockSpec((N_pad, H),  lambda i: (0, 0)),  # pinned W2 (out,in)
            pl.BlockSpec((N_pad, 1),  lambda i: (0, 0)),  # pinned b2 (column)
        ],
        out_specs=pl.BlockSpec((N_pad, bm), lambda i: (0, i)),  # transposed out
        compiler_params=pltpu.CompilerParams(
            dimension_semantics=("parallel",)),  # batch tiles are independent
        cost_estimate=cost,
    )(x, w1, b1_r, w2_p, b2_p)

    # Undo the transposed layout (tiny: 10 x B) and drop the sublane pad.
    return out_t[:N].T


def init_params(key):
    # Deterministic init mimicking nn.Linear's U(-1/sqrt(fan_in), 1/sqrt(fan_in)).
    k1, k2, k3, k4 = jax.random.split(key, 4)
    in1, h, out = 20, 256, 10
    bound1 = 1.0 / jnp.sqrt(in1)
    bound2 = 1.0 / jnp.sqrt(h)
    w1 = jax.random.uniform(k1, (in1, h), jnp.float32, -bound1, bound1)   # (in, hidden)
    b1 = jax.random.uniform(k2, (h,), jnp.float32, -bound1, bound1)
    w2 = jax.random.uniform(k3, (out, h), jnp.float32, -bound2, bound2)   # (out, in)
    b2 = jax.random.uniform(k4, (out,), jnp.float32, -bound2, bound2)
    return w1, b1, w2, b2


if __name__ == "__main__":
    key = jax.random.PRNGKey(0)
    kx, kp = jax.random.split(key)
    # X = torch.rand(2, 20)  ->  uniform [0,1), shape (2, 20)
    x = jax.random.uniform(kx, (2, 20), jnp.float32)
    w1, b1, w2, b2 = init_params(kp)

    # f32 path (tight check).
    out = jax.block_until_ready(mlp_forward(x, w1, b1, w2, b2))
    ref = jnp.maximum(x @ w1 + b1[None, :], 0.0) @ w2.T + b2[None, :]
    assert out.shape == (2, 10)
    assert jnp.allclose(out, ref, atol=1e-5, rtol=1e-5)

    # bf16 MXU-operand path (v6e/v7x fast path); f32 accumulation retained.
    out_bf16 = jax.block_until_ready(
        mlp_forward(x, w1.astype(jnp.bfloat16), b1,
                    w2.astype(jnp.bfloat16), b2))
    assert jnp.allclose(out_bf16, ref, atol=3e-2, rtol=3e-2)

    print("KERNEL_OK")
</pallas_src>

<mosaic_0001>
module attributes {stable_mosaic.version = 11 : i64} {
  func.func @mlp_kernel(%arg0: i32, %arg1: memref<128x20xf32, #tpu.memory_space<vmem>>, %arg2: memref<20x256xf32, #tpu.memory_space<vmem>>, %arg3: memref<1x256xf32, #tpu.memory_space<vmem>>, %arg4: memref<16x256xf32, #tpu.memory_space<vmem>>, %arg5: memref<16x1xf32, #tpu.memory_space<vmem>>, %arg6: memref<16x128xf32, #tpu.memory_space<vmem>>) attributes {dimension_semantics = [#tpu.dimension_semantics<parallel>], iteration_bounds = array<i64: 1>, scalar_prefetch = 0 : i64, scratch_operands = 0 : i64, tpu.core_type = #tpu.core_type<tc>, window_params = [{transform_indices = @transform_0, window_bounds = array<i64: 128, 20>}, {pipeline_mode = #tpu.pipeline_mode<synchronous>, transform_indices = @transform_1, window_bounds = array<i64: 20, 256>}, {pipeline_mode = #tpu.pipeline_mode<synchronous>, transform_indices = @transform_2, window_bounds = array<i64: 1, 256>}, {pipeline_mode = #tpu.pipeline_mode<synchronous>, transform_indices = @transform_3, window_bounds = array<i64: 16, 256>}, {pipeline_mode = #tpu.pipeline_mode<synchronous>, transform_indices = @transform_4, window_bounds = array<i64: 16, 1>}, {transform_indices = @transform_5, window_bounds = array<i64: 16, 128>}]} {
    %c0 = arith.constant 0 : index
    %c0_0 = arith.constant 0 : index
    %0 = vector.load %arg2[%c0, %c0_0] : memref<20x256xf32, #tpu.memory_space<vmem>>, vector<20x256xf32>
    %c0_1 = arith.constant 0 : index
    %c0_2 = arith.constant 0 : index
    %1 = vector.load %arg1[%c0_1, %c0_2] : memref<128x20xf32, #tpu.memory_space<vmem>>, vector<128x20xf32>
    %cst = arith.constant dense<0.000000e+00> : vector<128x256xf32>
    %2 = tpu.matmul %1, %0, %cst {dimension_numbers = #tpu.dot_dimension_numbers<[1], [0], [0], [1], [0, 0, 1, 1], [], []>} : vector<128x20xf32>, vector<20x256xf32>, vector<128x256xf32> -> vector<128x256xf32>
    %c0_3 = arith.constant 0 : index
    %c0_4 = arith.constant 0 : index
    %3 = vector.load %arg3[%c0_3, %c0_4] : memref<1x256xf32, #tpu.memory_space<vmem>>, vector<1x256xf32>
    %4 = vector.broadcast %3 : vector<1x256xf32> to vector<128x256xf32>
    %5 = arith.addf %2, %4 : vector<128x256xf32>
    %cst_5 = arith.constant 0.000000e+00 : f32
    %6 = vector.broadcast %cst_5 : f32 to vector<128x256xf32>
    %7 = arith.maximumf %5, %6 : vector<128x256xf32>
    %c0_6 = arith.constant 0 : index
    %c0_7 = arith.constant 0 : index
    %8 = vector.load %arg4[%c0_6, %c0_7] : memref<16x256xf32, #tpu.memory_space<vmem>>, vector<16x256xf32>
    %9 = tpu.transpose %7, [1, 0] : vector<128x256xf32> -> vector<256x128xf32>
    %cst_8 = arith.constant dense<0.000000e+00> : vector<16x128xf32>
    %10 = tpu.matmul %8, %9, %cst_8 {dimension_numbers = #tpu.dot_dimension_numbers<[1], [0], [0], [1], [0, 0, 1, 1], [], []>} : vector<16x256xf32>, vector<256x128xf32>, vector<16x128xf32> -> vector<16x128xf32>
    %c0_9 = arith.constant 0 : index
    %c0_10 = arith.constant 0 : index
    %11 = vector.load %arg5[%c0_9, %c0_10] : memref<16x1xf32, #tpu.memory_space<vmem>>, vector<16x1xf32>
    %12 = vector.broadcast %11 : vector<16x1xf32> to vector<16x128xf32>
    %13 = arith.addf %10, %12 : vector<16x128xf32>
    %c0_11 = arith.constant 0 : index
    %c0_12 = arith.constant 0 : index
    %14 = vector.load %arg6[%c0_11, %c0_12] : memref<16x128xf32, #tpu.memory_space<vmem>>, vector<16x128xf32>
    tpu.vector_store %arg6[%c0_11, %c0_12], %13 {strides = array<i32>} : memref<16x128xf32, #tpu.memory_space<vmem>>, vector<16x128xf32>,
    return
  }
  func.func @transform_0(%arg0: i32) -> (i32, i32) {
    %c0_i32 = arith.constant 0 : i32
    %c0_i32_0 = arith.constant 0 : i32
    return %arg0, %c0_i32 : i32, i32
  }
  func.func @transform_1(%arg0: i32) -> (i32, i32) {
    %c0_i32 = arith.constant 0 : i32
    %c0_i32_0 = arith.constant 0 : i32
    %c0_i32_1 = arith.constant 0 : i32
    return %c0_i32, %c0_i32_0 : i32, i32
  }
  func.func @transform_2(%arg0: i32) -> (i32, i32) {
    %c0_i32 = arith.constant 0 : i32
    %c0_i32_0 = arith.constant 0 : i32
    %c0_i32_1 = arith.constant 0 : i32
    return %c0_i32, %c0_i32_0 : i32, i32
  }
  func.func @transform_3(%arg0: i32) -> (i32, i32) {
    %c0_i32 = arith.constant 0 : i32
    %c0_i32_0 = arith.constant 0 : i32
    %c0_i32_1 = arith.constant 0 : i32
    return %c0_i32, %c0_i32_0 : i32, i32
  }
  func.func @transform_4(%arg0: i32) -> (i32, i32) {
    %c0_i32 = arith.constant 0 : i32
    %c0_i32_0 = arith.constant 0 : i32
    %c0_i32_1 = arith.constant 0 : i32
    return %c0_i32, %c0_i32_0 : i32, i32
  }
  func.func @transform_5(%arg0: i32) -> (i32, i32) {
    %c0_i32 = arith.constant 0 : i32
    %c0_i32_0 = arith.constant 0 : i32
    return %c0_i32, %arg0 : i32, i32
  }
}

</mosaic_0001>

<llo_original>
// kernel: tpu_custom_call.1
$region0: #{tpu_custom_call.1}
  #allocation0 [shape = 'u32[]', space=smem, size = 0x4, offset = 0x4, fixed_abs, tag = 'smem constant byte address 0x4 - core index']
  #allocation1 [shape = 'u32[72,128]{1,0:T(1,128)}', space=vmem, size = 0x9000, scoped, tag = 'internal scratch']
  %s0 = inlined_call_operand.vmem [shape: f32[2,20], index: 0, kind: input, shape index: {}]
  %s1 = inlined_call_operand.hbm [shape: f32[20,256], index: 1, kind: input, shape index: {}]
  %s2 = inlined_call_operand.vmem [shape: f32[1,256], index: 2, kind: input, shape index: {}]
  %s3 = inlined_call_operand.hbm [shape: f32[16,256], index: 3, kind: input, shape index: {}]
  %s4 = inlined_call_operand.vmem [shape: f32[16,1], index: 4, kind: input, shape index: {}]
  %s5 = inlined_call_operand.vmem [shape: f32[16,2], index: 5, kind: output, shape index: {}]
  %s6 = sld [smem:[#allocation0]]
  $region38: #{tpu_custom_call.1} parent=0
    _
  %s8 = ssub.s32 1, %s6
  %s9 = scalar_select 0, %s8, %s6
  $region1: #{tpu_custom_call.1} parent=0
    #allocation2 [shape = 'u8[24576]{0}', space=vmem, size = 0x6000, scoped, tag = 'input window, operand 1, single buffered']
    #allocation3 [shape = 's32[1]{0}', space=sflag, size = 0x4, scoped, tag = 'scoped memory for tpu_custom_call.1']
    #allocation4 [shape = 'u8[16384]{0}', space=vmem, size = 0x4000, scoped, tag = 'input window, operand 3, single buffered']
    #allocation5 [shape = 's32[1]{0}', space=sflag, size = 0x4, scoped, tag = 'scoped memory for tpu_custom_call.1']
    %10 = vsyncpa [#allocation3], 0
    %11 = vsyncpa [#allocation5], 0
    // Predicated region
    $region2: #{tpu_custom_call.1} parent=1 // pred_check
      _
    $region3: #{tpu_custom_call.1} parent=1 // pred_check_branch
      %13 = sbr.rel (0) target = $region5
    $region4: #{tpu_custom_call.1} parent=1 // pred_region
      _
    $region5: #{tpu_custom_call.1} parent=1 // pred_fallthru
      _
    // Predicated region
    $region6: #{tpu_custom_call.1} parent=1 // pred_check
      _
    $region7: #{tpu_custom_call.1} parent=1 // pred_check_branch
      %15 = sbr.rel (0) target = $region9
    $region8: #{tpu_custom_call.1} parent=1 // pred_region
      %17 = vsyncadd [#allocation3], 0
      %s18 = sshll.u32 %s1, 4
      %s19 = int_to_ptr.hbm [resolvable:$true] %s18
      %s20 = sshll.u32 [#allocation2], 4
      %s21 = int_to_ptr.vmem [resolvable:$true] %s20
      %26 = dma.hbm_to_vmem [thread:$0]  %s19, 768, %s21, [#allocation3], 256, 256, 16
    $region9: #{tpu_custom_call.1} parent=1 // pred_fallthru
      _
    // Predicated region
    $region10: #{tpu_custom_call.1} parent=1 // pred_check
      _
    $region11: #{tpu_custom_call.1} parent=1 // pred_check_branch
      %28 = sbr.rel (0) target = $region13
    $region12: #{tpu_custom_call.1} parent=1 // pred_region
      _
    $region13: #{tpu_custom_call.1} parent=1 // pred_fallthru
      _
    // Predicated region
    $region14: #{tpu_custom_call.1} parent=1 // pred_check
      _
    $region15: #{tpu_custom_call.1} parent=1 // pred_check_branch
      %30 = sbr.rel (0) target = $region17
    $region16: #{tpu_custom_call.1} parent=1 // pred_region
      %32 = vsyncadd [#allocation5], 0
      %s33 = sshll.u32 %s3, 4
      %s34 = int_to_ptr.hbm [resolvable:$true] %s33
      %s35 = sshll.u32 [#allocation4], 4
      %s36 = int_to_ptr.vmem [resolvable:$true] %s35
      %41 = dma.hbm_to_vmem [thread:$0]  %s34, 512, %s36, [#allocation5], 256, 256, 16
    $region17: #{tpu_custom_call.1} parent=1 // pred_fallthru
      _
    // Predicated region
    $region18: #{tpu_custom_call.1} parent=1 // pred_check
      _
    $region19: #{tpu_custom_call.1} parent=1 // pred_check_branch
      %43 = sbr.rel (0) target = $region21
    $region20: #{tpu_custom_call.1} parent=1 // pred_region
      _
    $region21: #{tpu_custom_call.1} parent=1 // pred_fallthru
      _
    // Predicated region
    $region22: #{tpu_custom_call.1} parent=1 // pred_check
      _
    $region23: #{tpu_custom_call.1} parent=1 // pred_check_branch
      %45 = sbr.rel (0) target = $region25
    $region24: #{tpu_custom_call.1} parent=1 // pred_region
      %47 = dma.done [#allocation3], 768
    $region25: #{tpu_custom_call.1} parent=1 // pred_fallthru
      _
    // Predicated region
    $region26: #{tpu_custom_call.1} parent=1 // pred_check
      _
    $region27: #{tpu_custom_call.1} parent=1 // pred_check_branch
      %49 = sbr.rel (0) target = $region29
    $region28: #{tpu_custom_call.1} parent=1 // pred_region
      %51 = dma.done [#allocation5], 512
    $region29: #{tpu_custom_call.1} parent=1 // pred_fallthru
      _
    %v52 = vld [vmem:[#allocation2] sm:$0xff]
    %v53 = vld [vmem:[#allocation2 + $0x8] sm:$0xff]
    %v54 = vld [vmem:[#allocation2 + $0x10] sm:$0xff]
    %v55 = vld [vmem:[#allocation2 + $0x18] sm:$0xff]
    %v56 = vld [vmem:[#allocation2 + $0x20] sm:$0xf]
    %v57 = vld [vmem:[#allocation2 + $0x28] sm:$0xf]
    %v58 = vld [vmem:[%s0] sm:$0xff]
    %v59 = vld [vmem:[%s0 + $0x8] sm:$0xff]
    %v60 = vld [vmem:[%s0 + $0x10] sm:$0xff]
    %v61 = vld [vmem:[%s0 + $0x18] sm:$0xff]
    %v62 = vld [vmem:[%s0 + $0x20] sm:$0xff]
    %v63 = vld [vmem:[%s0 + $0x28] sm:$0xff]
    %v64 = vld [vmem:[%s0 + $0x30] sm:$0xff]
    %v65 = vld [vmem:[%s0 + $0x38] sm:$0xff]
    %v66 = vld [vmem:[%s0 + $0x40] sm:$0xff]
    %v67 = vld [vmem:[%s0 + $0x48] sm:$0xff]
    %v68 = vld [vmem:[%s0 + $0x50] sm:$0xff]
    %v69 = vld [vmem:[%s0 + $0x58] sm:$0xff]
    %v70 = vld [vmem:[%s0 + $0x60] sm:$0xff]
    %v71 = vld [vmem:[%s0 + $0x68] sm:$0xff]
    %v72 = vld [vmem:[%s0 + $0x70] sm:$0xff]
    %v73 = vld [vmem:[%s0 + $0x78] sm:$0xff]
    %v74 = vld [vmem:[%s2] sm:$0x3]
    %v76 = vperm.slane %v74, 0
    %v77 = vperm.slane %v74, 1
    %vm80 = vcmask 162816
    %v82 = vsel %vm80, %v58, 0
    %v85 = vsel %vm80, %v59, 0
    %v88 = vsel %vm80, %v60, 0
    %v91 = vsel %vm80, %v61, 0
    %v94 = vsel %vm80, %v62, 0
    %v97 = vsel %vm80, %v63, 0
    %v100 = vsel %vm80, %v64, 0
    %v103 = vsel %vm80, %v65, 0
    %v106 = vsel %vm80, %v66, 0
    %v109 = vsel %vm80, %v67, 0
    %v112 = vsel %vm80, %v68, 0
    %v115 = vsel %vm80, %v69, 0
    %v118 = vsel %vm80, %v70, 0
    %v121 = vsel %vm80, %v71, 0
    %v124 = vsel %vm80, %v72, 0
    %v127 = vsel %vm80, %v73, 0
    %vm129 = vcmask 1043456
    %v131 = vsel %vm129, %v56, 0
    %v134 = vsel %vm129, %v57, 0
    %136 = vmatpush.msra.mxu0 0.0
    %137 = vmatpush.msra.mxu0 0.0
    %138 = vmatpush.msra.mxu0 0.0
    %139 = vmatpush.msra.mxu0 0.0
    %140 = vmatpush.msra.mxu0 0.0
    %141 = vmatpush.msra.mxu0 0.0
    %142 = vmatpush.msra.mxu0 0.0
    %143 = vmatpush.msra.mxu0 0.0
    %144 = vmatpush.msra.mxu0 0.0
    %145 = vmatpush.msra.mxu0 0.0
    %146 = vmatpush.msra.mxu0 0.0
    %147 = vmatpush.msra.mxu0 0.0
    %148 = vmatpush.msra.mxu0 0.0
    %149 = vmatpush.msra.mxu0 %v131
    %150 = vmatpush.msra.mxu0 %v54
    %151 = vmatpush.msra.mxu0 %v52
    %152 = vmatmul.f32.gmra.mxu0 %v82
    %v153 = vpop.f32.mrf.mxu0
    %v154 = vadd.f32 %v76, %v153
    %155 = vmatmul.f32.gmra.mxu0 %v85
    %v156 = vpop.f32.mrf.mxu0
    %v157 = vadd.f32 %v76, %v156
    %158 = vmatmul.f32.gmra.mxu0 %v88
    %v159 = vpop.f32.mrf.mxu0
    %v160 = vadd.f32 %v76, %v159
    %161 = vmatmul.f32.gmra.mxu0 %v91
    %v162 = vpop.f32.mrf.mxu0
    %v163 = vadd.f32 %v76, %v162
    %164 = vmatmul.f32.gmra.mxu0 %v94
    %v165 = vpop.f32.mrf.mxu0
    %v166 = vadd.f32 %v76, %v165
    %167 = vmatmul.f32.gmra.mxu0 %v97
    %v168 = vpop.f32.mrf.mxu0
    %v169 = vadd.f32 %v76, %v168
    %170 = vmatmul.f32.gmra.mxu0 %v100
    %v171 = vpop.f32.mrf.mxu0
    %v172 = vadd.f32 %v76, %v171
    %173 = vmatmul.f32.gmra.mxu0 %v103
    %v174 = vpop.f32.mrf.mxu0
    %v175 = vadd.f32 %v76, %v174
    %176 = vmatmul.f32.gmra.mxu0 %v106
    %v177 = vpop.f32.mrf.mxu0
    %v178 = vadd.f32 %v76, %v177
    %179 = vmatmul.f32.gmra.mxu0 %v109
    %v180 = vpop.f32.mrf.mxu0
    %v181 = vadd.f32 %v76, %v180
    %182 = vmatmul.f32.gmra.mxu0 %v112
    %v183 = vpop.f32.mrf.mxu0
    %v184 = vadd.f32 %v76, %v183
    %185 = vmatmul.f32.gmra.mxu0 %v115
    %v186 = vpop.f32.mrf.mxu0
    %v187 = vadd.f32 %v76, %v186
    %188 = vmatmul.f32.gmra.mxu0 %v118
    %v189 = vpop.f32.mrf.mxu0
    %v190 = vadd.f32 %v76, %v189
    %191 = vmatmul.f32.gmra.mxu0 %v121
    %v192 = vpop.f32.mrf.mxu0
    %v193 = vadd.f32 %v76, %v192
    %194 = vmatmul.f32.gmra.mxu0 %v124
    %v195 = vpop.f32.mrf.mxu0
    %v196 = vadd.f32 %v76, %v195
    %197 = vmatmul.f32.gmra.mxu0 %v127
    %v198 = vpop.f32.mrf.mxu0
    %v199 = vadd.f32 %v76, %v198
    %200 = vdwg.mxu0
    %201 = vmatpush.msra.mxu0 0.0
    %202 = vmatpush.msra.mxu0 0.0
    %203 = vmatpush.msra.mxu0 0.0
    %204 = vmatpush.msra.mxu0 0.0
    %205 = vmatpush.msra.mxu0 0.0
    %206 = vmatpush.msra.mxu0 0.0
    %207 = vmatpush.msra.mxu0 0.0
    %208 = vmatpush.msra.mxu0 0.0
    %209 = vmatpush.msra.mxu0 0.0
    %210 = vmatpush.msra.mxu0 0.0
    %211 = vmatpush.msra.mxu0 0.0
    %212 = vmatpush.msra.mxu0 0.0
    %213 = vmatpush.msra.mxu0 0.0
    %214 = vmatpush.msra.mxu0 %v134
    %215 = vmatpush.msra.mxu0 %v55
    %216 = vmatpush.msra.mxu0 %v53
    %217 = vmatmul.f32.gmra.mxu0 %v82
    %v218 = vpop.f32.mrf.mxu0
    %v219 = vadd.f32 %v77, %v218
    %220 = vmatmul.f32.gmra.mxu0 %v85
    %v221 = vpop.f32.mrf.mxu0
    %v222 = vadd.f32 %v77, %v221
    %223 = vmatmul.f32.gmra.mxu0 %v88
    %v224 = vpop.f32.mrf.mxu0
    %v225 = vadd.f32 %v77, %v224
    %226 = vmatmul.f32.gmra.mxu0 %v91
    %v227 = vpop.f32.mrf.mxu0
    %v228 = vadd.f32 %v77, %v227
    %229 = vmatmul.f32.gmra.mxu0 %v94
    %v230 = vpop.f32.mrf.mxu0
    %v231 = vadd.f32 %v77, %v230
    %232 = vmatmul.f32.gmra.mxu0 %v97
    %v233 = vpop.f32.mrf.mxu0
    %v234 = vadd.f32 %v77, %v233
    %235 = vmatmul.f32.gmra.mxu0 %v100
    %v236 = vpop.f32.mrf.mxu0
    %v237 = vadd.f32 %v77, %v236
    %238 = vmatmul.f32.gmra.mxu0 %v103
    %v239 = vpop.f32.mrf.mxu0
    %v240 = vadd.f32 %v77, %v239
    %241 = vmatmul.f32.gmra.mxu0 %v106
    %v242 = vpop.f32.mrf.mxu0
    %v243 = vadd.f32 %v77, %v242
    %244 = vmatmul.f32.gmra.mxu0 %v109
    %v245 = vpop.f32.mrf.mxu0
    %v246 = vadd.f32 %v77, %v245
    %247 = vmatmul.f32.gmra.mxu0 %v112
    %v248 = vpop.f32.mrf.mxu0
    %v249 = vadd.f32 %v77, %v248
    %250 = vmatmul.f32.gmra.mxu0 %v115
    %v251 = vpop.f32.mrf.mxu0
    %v252 = vadd.f32 %v77, %v251
    %253 = vmatmul.f32.gmra.mxu0 %v118
    %v254 = vpop.f32.mrf.mxu0
    %v255 = vadd.f32 %v77, %v254
    %256 = vmatmul.f32.gmra.mxu0 %v121
    %v257 = vpop.f32.mrf.mxu0
    %v258 = vadd.f32 %v77, %v257
    %259 = vmatmul.f32.gmra.mxu0 %v124
    %v260 = vpop.f32.mrf.mxu0
    %v261 = vadd.f32 %v77, %v260
    %262 = vmatmul.f32.gmra.mxu0 %v127
    %v263 = vpop.f32.mrf.mxu0
    %v264 = vadd.f32 %v77, %v263
    %265 = vdwg.mxu0
    %v266 = vmax.f32 %v154, 0.0
    %v267 = vmax.f32 %v219, 0.0
    %v268 = vmax.f32 %v157, 0.0
    %v269 = vmax.f32 %v222, 0.0
    %v270 = vmax.f32 %v160, 0.0
    %v271 = vmax.f32 %v225, 0.0
    %v272 = vmax.f32 %v163, 0.0
    %v273 = vmax.f32 %v228, 0.0
    %v274 = vmax.f32 %v166, 0.0
    %v275 = vmax.f32 %v231, 0.0
    %v276 = vmax.f32 %v169, 0.0
    %v277 = vmax.f32 %v234, 0.0
    %v278 = vmax.f32 %v172, 0.0
    %v279 = vmax.f32 %v237, 0.0
    %v280 = vmax.f32 %v175, 0.0
    %v281 = vmax.f32 %v240, 0.0
    %v282 = vmax.f32 %v178, 0.0
    %v283 = vmax.f32 %v243, 0.0
    %v284 = vmax.f32 %v181, 0.0
    %v285 = vmax.f32 %v246, 0.0
    %v286 = vmax.f32 %v184, 0.0
    %v287 = vmax.f32 %v249, 0.0
    %v288 = vmax.f32 %v187, 0.0
    %v289 = vmax.f32 %v252, 0.0
    %v290 = vmax.f32 %v190, 0.0
    %v291 = vmax.f32 %v255, 0.0
    %v292 = vmax.f32 %v193, 0.0
    %v293 = vmax.f32 %v258, 0.0
    %v294 = vmax.f32 %v196, 0.0
    %v295 = vmax.f32 %v261, 0.0
    %v296 = vmax.f32 %v199, 0.0
    %v297 = vmax.f32 %v264, 0.0
    %v298 = vld [vmem:[#allocation4] sm:$0xff]
    %v299 = vld [vmem:[#allocation4 + $0x8] sm:$0xff]
    %v300 = vld [vmem:[#allocation4 + $0x10] sm:$0xff]
    %v301 = vld [vmem:[#allocation4 + $0x18] sm:$0xff]
    %v302 = vld [vmem:[%s4] sm:$0xff]
    %v303 = vld [vmem:[%s4 + $0x8] sm:$0xff]
    %305 = vset.pattern.permute.xlu0 0
    %306 = vperm.xlu0 %305, %v302
    %v307 = vpop.permute.xlu0 %306
    %310 = vset.pattern.permute.xlu0 0
    %311 = vperm.xlu0 %310, %v303
    %v312 = vpop.permute.xlu0 %311
    %314 = vmatpush.xpose.msra.mxu0 %v296
    %315 = vmatpush.xpose.msra.mxu0 %v294
    %316 = vmatpush.xpose.msra.mxu0 %v292
    %317 = vmatpush.xpose.msra.mxu0 %v290
    %318 = vmatpush.xpose.msra.mxu0 %v288
    %319 = vmatpush.xpose.msra.mxu0 %v286
    %320 = vmatpush.xpose.msra.mxu0 %v284
    %321 = vmatpush.xpose.msra.mxu0 %v282
    %322 = vmatpush.xpose.msra.mxu0 %v280
    %323 = vmatpush.xpose.msra.mxu0 %v278
    %324 = vmatpush.xpose.msra.mxu0 %v276
    %325 = vmatpush.xpose.msra.mxu0 %v274
    %326 = vmatpush.xpose.msra.mxu0 %v272
    %327 = vmatpush.xpose.msra.mxu0 %v270
    %328 = vmatpush.xpose.msra.mxu0 %v268
    %329 = vmatpush.xpose.msra.mxu0 %v266
    %330 = vmatmul.f32.gmra.mxu0 %v298
    %v331 = vpop.f32.mrf.mxu0
    %v332 = vadd.f32 %v307, %v331
    %333 = vmatmul.f32.gmra.mxu0 %v300
    %v334 = vpop.f32.mrf.mxu0
    %v335 = vadd.f32 %v312, %v334
    %336 = vdwg.mxu0
    %337 = vmatpush.xpose.msra.mxu0 %v297
    %338 = vmatpush.xpose.msra.mxu0 %v295
    %339 = vmatpush.xpose.msra.mxu0 %v293
    %340 = vmatpush.xpose.msra.mxu0 %v291
    %341 = vmatpush.xpose.msra.mxu0 %v289
    %342 = vmatpush.xpose.msra.mxu0 %v287
    %343 = vmatpush.xpose.msra.mxu0 %v285
    %344 = vmatpush.xpose.msra.mxu0 %v283
    %345 = vmatpush.xpose.msra.mxu0 %v281
    %346 = vmatpush.xpose.msra.mxu0 %v279
    %347 = vmatpush.xpose.msra.mxu0 %v277
    %348 = vmatpush.xpose.msra.mxu0 %v275
    %349 = vmatpush.xpose.msra.mxu0 %v273
    %350 = vmatpush.xpose.msra.mxu0 %v271
    %351 = vmatpush.xpose.msra.mxu0 %v269
    %352 = vmatpush.xpose.msra.mxu0 %v267
    %353 = vmatmul.f32.gmra.mxu0 %v299
    %v354 = vpop.f32.mrf.mxu0
    %v355 = vadd.f32 %v332, %v354
    %356 = vmatmul.f32.gmra.mxu0 %v301
    %v357 = vpop.f32.mrf.mxu0
    %v358 = vadd.f32 %v335, %v357
    %359 = vdwg.mxu0
    %360 = vst [vmem:[%s5] sm:$0xff] %v355
    %361 = vst [vmem:[%s5 + $0x8] sm:$0xff] %v358
    // Predicated region
    $region30: #{tpu_custom_call.1} parent=1 // pred_check
      _
    $region31: #{tpu_custom_call.1} parent=1 // pred_check_branch
      %363 = sbr.rel (0) target = $region33
    $region32: #{tpu_custom_call.1} parent=1 // pred_region
      _
    $region33: #{tpu_custom_call.1} parent=1 // pred_fallthru
      _
    // Predicated region
    $region34: #{tpu_custom_call.1} parent=1 // pred_check
      _
    $region35: #{tpu_custom_call.1} parent=1 // pred_check_branch
      %365 = sbr.rel (0) target = $region37
    $region36: #{tpu_custom_call.1} parent=1 // pred_region
      _
    $region37: #{tpu_custom_call.1} parent=1 // pred_fallthru
      _
    %366 = vsyncpa [#allocation3], 1
    %367 = vsyncpa [#allocation5], 1

</llo_original>
